<compile_context>
chip_gen: v7x
topology: tpu7x:2x2x1
jax: 0.10.0
libtpu: 0.0.40
codegen_flags: <defaults>
</compile_context>

<pallas_src>
import functools

import jax
import jax.numpy as jnp
from jax.experimental import pallas as pl
from jax.experimental.pallas import tpu as pltpu

LAYER_NORM_EPS = 1e-12


def _round_up(x, m):
    return ((x + m - 1) // m) * m


# ---------------------------------------------------------------------------
# Pallas kernel: LayerNorm over a dense (TM, H) tile (bf16 in/out, f32 math)
# ---------------------------------------------------------------------------
def _ln_kernel(x_ref, g_ref, b_ref, o_ref, *, hidden):
    # x_ref: (TM, H) bf16   pre-summed embeddings (word-debiased + pos + type)
    # g_ref/b_ref: (1, H) f32  LayerNorm gamma / beta (resident blocks)
    x = x_ref[...].astype(jnp.float32)                     # (TM, H) f32
    inv_h = jnp.float32(1.0 / hidden)

    # Single-pass statistics: sum and sum-of-squares (one XLU reduce each),
    # E[x^2] - mean^2 form keeps f32 temporaries to a minimum.
    s = jnp.sum(x, axis=-1, keepdims=True)                 # (TM, 1)
    ss = jnp.sum(x * x, axis=-1, keepdims=True)            # (TM, 1)
    mean = s * inv_h
    var = jnp.maximum(ss * inv_h - mean * mean, 0.0)
    inv_std = jax.lax.rsqrt(var + LAYER_NORM_EPS)

    o_ref[...] = ((x - mean) * inv_std * g_ref[...] + b_ref[...]).astype(o_ref.dtype)
    # TODO(synk): dropout is treated as identity (eval/inference semantics).


# ---------------------------------------------------------------------------
# Wrapper
# ---------------------------------------------------------------------------
def bert_embeddings_with_debias(input_ids, token_type_ids, position_ids,
                                debiased_word_emb, pos_emb, type_emb,
                                ln_gamma, ln_beta,
                                *, block_tokens=1024,
                                stream_dtype=jnp.bfloat16,
                                out_dtype=jnp.bfloat16):
    """Forward pass.  `debiased_word_emb` = word_emb - bias_transformations,
    precomputed once at param-load time (see init_params)."""
    B, S = input_ids.shape
    H = debiased_word_emb.shape[1]
    n_tok = B * S

    ids = input_ids.reshape(n_tok).astype(jnp.int32)
    pos = position_ids.reshape(n_tok).astype(jnp.int32)
    tts = token_type_ids.reshape(n_tok).astype(jnp.int32)

    # --- token-block size: as big as practical, but keep >= 2 grid steps when
    # possible so both v7x TensorCores get work.
    n_pad8 = _round_up(n_tok, 8)
    tm = min(block_tokens, n_pad8)
    if n_pad8 >= 16 and tm > n_pad8 // 2:
        tm = _round_up(n_pad8 // 2, 8)
    n_pad = _round_up(n_tok, tm)

    # Pad the tiny 1-D index vectors BEFORE the gathers (padded rows gather
    # index 0 and are sliced off at the end).
    if n_pad != n_tok:
        pad = n_pad - n_tok
        ids = jnp.pad(ids, (0, pad))
        pos = jnp.pad(pos, (0, pad))
        tts = jnp.pad(tts, (0, pad))

    # Single fused pre-sum stream: XLA fuses the three gather-adds into one
    # (n_pad, H) bf16 output, and the kernel reads exactly one tiled stream.
    x_pre = (jnp.take(debiased_word_emb.astype(jnp.float32), ids, axis=0)
             + jnp.take(pos_emb.astype(jnp.float32), pos, axis=0)
             + jnp.take(type_emb.astype(jnp.float32), tts, axis=0)
             ).astype(stream_dtype)                        # (n_pad, H)

    gamma2d = ln_gamma.reshape(1, H).astype(jnp.float32)
    beta2d = ln_beta.reshape(1, H).astype(jnp.float32)

    kernel = functools.partial(_ln_kernel, hidden=H)

    out_flat = pl.pallas_call(
        kernel,
        out_shape=jax.ShapeDtypeStruct((n_pad, H), out_dtype),
        grid_spec=pltpu.PrefetchScalarGridSpec(
            num_scalar_prefetch=0,
            grid=(n_pad // tm,),
            in_specs=[
                pl.BlockSpec((tm, H), lambda i: (i, 0)),    # fused embedding stream
                pl.BlockSpec((1, H), lambda i: (0, 0)),     # gamma (resident)
                pl.BlockSpec((1, H), lambda i: (0, 0)),     # beta  (resident)
            ],
            out_specs=pl.BlockSpec((tm, H), lambda i: (i, 0)),
        ),
        compiler_params=pltpu.CompilerParams(
            dimension_semantics=("parallel",),
            vmem_limit_bytes=48 * 1024 * 1024),
    )(x_pre, gamma2d, beta2d)

    return out_flat[:n_tok].reshape(B, S, H)


# ---------------------------------------------------------------------------
# Deterministic parameter setup (mirrors the module __init__) — the debias
# table is folded into the word table HERE, once, not per forward call.
# ---------------------------------------------------------------------------
def init_params(key, vocab_size, hidden_size, max_pos, type_vocab, pad_token_id,
                scaling_token_ids_set_list):
    k1, k2, k3 = jax.random.split(key, 3)
    word_emb = 0.02 * jax.random.normal(k1, (vocab_size, hidden_size), jnp.float32)
    # nn.Embedding padding_idx row is zero-initialised
    word_emb = word_emb.at[pad_token_id].set(0.0)
    pos_emb = 0.02 * jax.random.normal(k2, (max_pos, hidden_size), jnp.float32)
    type_emb = 0.02 * jax.random.normal(k3, (type_vocab, hidden_size), jnp.float32)
    ln_gamma = jnp.ones((hidden_size,), jnp.float32)
    ln_beta = jnp.zeros((hidden_size,), jnp.float32)

    # bias_transformations[scaling_ids] = word_emb[scaling_ids] - mean(word_emb[scaling_ids])
    bias_trans = jnp.zeros((vocab_size, hidden_size), jnp.float32)
    for scaling_token_ids_set in scaling_token_ids_set_list:
        for scaling_ids in scaling_token_ids_set:
            idx = jnp.asarray(scaling_ids, dtype=jnp.int32)
            biased = word_emb[idx]                       # (n, H)
            mean_embedding = biased.mean(axis=0)         # (H,)
            bias_trans = bias_trans.at[idx].set(biased - mean_embedding)

    # One-time fold (param-load time): per-call gathers only touch n_tok rows.
    debiased_word_emb = word_emb - bias_trans

    return (word_emb, bias_trans, debiased_word_emb, pos_emb, type_emb,
            ln_gamma, ln_beta)


# ---------------------------------------------------------------------------
# Pure-JAX f32 reference of the original forward pass (for a sanity check)
# ---------------------------------------------------------------------------
def reference_forward(input_ids, token_type_ids, position_ids,
                      word_emb, bias_trans, pos_emb, type_emb, ln_gamma, ln_beta):
    x = (word_emb[input_ids] - bias_trans[input_ids]
         + pos_emb[position_ids] + type_emb[token_type_ids])
    mean = x.mean(axis=-1, keepdims=True)
    var = ((x - mean) ** 2).mean(axis=-1, keepdims=True)
    xhat = (x - mean) * jax.lax.rsqrt(var + LAYER_NORM_EPS)
    return xhat * ln_gamma + ln_beta


if __name__ == "__main__":
    # small, forward-consistent shapes
    B, S = 2, 8
    vocab_size, hidden_size = 64, 128
    max_pos, type_vocab, pad_token_id = 32, 2, 0

    # groups of "biased" token ids (as in the module __init__)
    scaling_token_ids_set_list = [
        [[3, 5, 7], [9, 11]],
        [[20, 21, 22, 23]],
    ]

    key = jax.random.PRNGKey(0)
    kp, ki = jax.random.split(key)
    (word_emb, bias_trans, debiased_word_emb, pos_emb, type_emb,
     ln_gamma, ln_beta) = init_params(kp, vocab_size, hidden_size, max_pos,
                                      type_vocab, pad_token_id,
                                      scaling_token_ids_set_list)

    input_ids = jax.random.randint(ki, (B, S), 0, vocab_size, dtype=jnp.int32)
    token_type_ids = jnp.zeros((B, S), dtype=jnp.int32)
    # make a few tokens type 1 so the type-embedding path is actually exercised
    token_type_ids = token_type_ids.at[:, S // 2:].set(1)
    position_ids = jnp.broadcast_to(jnp.arange(S, dtype=jnp.int32), (B, S))

    fwd = jax.jit(bert_embeddings_with_debias)
    out = fwd(input_ids, token_type_ids, position_ids,
              debiased_word_emb, pos_emb, type_emb, ln_gamma, ln_beta)
    out = jax.block_until_ready(out)

    ref = reference_forward(input_ids, token_type_ids, position_ids,
                            word_emb, bias_trans, pos_emb, type_emb,
                            ln_gamma, ln_beta)
    assert out.shape == (B, S, hidden_size)
    # bf16 stream + bf16 output -> relaxed tolerance vs. the f32 reference.
    assert jnp.allclose(out.astype(jnp.float32), ref, atol=5e-2, rtol=5e-2)
    print("KERNEL_OK")
</pallas_src>

<mosaic_0001>
module attributes {stable_mosaic.version = 11 : i64} {
  func.func @_ln_kernel(%arg0: i32, %arg1: memref<8x128xbf16, #tpu.memory_space<vmem>>, %arg2: memref<1x128xf32, #tpu.memory_space<vmem>>, %arg3: memref<1x128xf32, #tpu.memory_space<vmem>>, %arg4: memref<8x128xbf16, #tpu.memory_space<vmem>>) attributes {dimension_semantics = [#tpu.dimension_semantics<parallel>], iteration_bounds = array<i64: 2>, scalar_prefetch = 0 : i64, scratch_operands = 0 : i64, tpu.core_type = #tpu.core_type<tc>, window_params = [{transform_indices = @transform_0, window_bounds = array<i64: 8, 128>}, {pipeline_mode = #tpu.pipeline_mode<synchronous>, transform_indices = @transform_1, window_bounds = array<i64: 1, 128>}, {pipeline_mode = #tpu.pipeline_mode<synchronous>, transform_indices = @transform_2, window_bounds = array<i64: 1, 128>}, {transform_indices = @transform_3, window_bounds = array<i64: 8, 128>}]} {
    %c0 = arith.constant 0 : index
    %c0_0 = arith.constant 0 : index
    %0 = vector.load %arg1[%c0, %c0_0] : memref<8x128xbf16, #tpu.memory_space<vmem>>, vector<8x128xbf16>
    %1 = arith.extf %0 : vector<8x128xbf16> to vector<8x128xf32>
    %cst = arith.constant dense<0.000000e+00> : vector<8xf32>
    %2 = vector.multi_reduction <add>, %1, %cst [1] : vector<8x128xf32> to vector<8xf32>
    %3 = vector.shape_cast %2 : vector<8xf32> to vector<8x1xf32>
    %4 = arith.mulf %1, %1 : vector<8x128xf32>
    %cst_1 = arith.constant dense<0.000000e+00> : vector<8xf32>
    %5 = vector.multi_reduction <add>, %4, %cst_1 [1] : vector<8x128xf32> to vector<8xf32>
    %6 = vector.shape_cast %5 : vector<8xf32> to vector<8x1xf32>
    %cst_2 = arith.constant 7.812500e-03 : f32
    %7 = vector.broadcast %cst_2 : f32 to vector<8x1xf32>
    %8 = arith.mulf %3, %7 : vector<8x1xf32>
    %cst_3 = arith.constant 7.812500e-03 : f32
    %9 = vector.broadcast %cst_3 : f32 to vector<8x1xf32>
    %10 = arith.mulf %6, %9 : vector<8x1xf32>
    %11 = arith.mulf %8, %8 : vector<8x1xf32>
    %12 = arith.subf %10, %11 : vector<8x1xf32>
    %cst_4 = arith.constant 0.000000e+00 : f32
    %13 = vector.broadcast %cst_4 : f32 to vector<8x1xf32>
    %14 = arith.maximumf %12, %13 : vector<8x1xf32>
    %cst_5 = arith.constant 9.99999996E-13 : f32
    %15 = vector.broadcast %cst_5 : f32 to vector<8x1xf32>
    %16 = arith.addf %14, %15 : vector<8x1xf32>
    %17 = math.rsqrt %16 : vector<8x1xf32>
    %18 = vector.broadcast %8 : vector<8x1xf32> to vector<8x128xf32>
    %19 = arith.subf %1, %18 : vector<8x128xf32>
    %20 = vector.broadcast %17 : vector<8x1xf32> to vector<8x128xf32>
    %21 = arith.mulf %19, %20 : vector<8x128xf32>
    %c0_6 = arith.constant 0 : index
    %c0_7 = arith.constant 0 : index
    %22 = vector.load %arg2[%c0_6, %c0_7] : memref<1x128xf32, #tpu.memory_space<vmem>>, vector<1x128xf32>
    %23 = vector.broadcast %22 : vector<1x128xf32> to vector<8x128xf32>
    %24 = arith.mulf %21, %23 : vector<8x128xf32>
    %c0_8 = arith.constant 0 : index
    %c0_9 = arith.constant 0 : index
    %25 = vector.load %arg3[%c0_8, %c0_9] : memref<1x128xf32, #tpu.memory_space<vmem>>, vector<1x128xf32>
    %26 = vector.broadcast %25 : vector<1x128xf32> to vector<8x128xf32>
    %27 = arith.addf %24, %26 : vector<8x128xf32>
    %28 = arith.truncf %27 : vector<8x128xf32> to vector<8x128xbf16>
    %c0_10 = arith.constant 0 : index
    %c0_11 = arith.constant 0 : index
    %29 = vector.load %arg4[%c0_10, %c0_11] : memref<8x128xbf16, #tpu.memory_space<vmem>>, vector<8x128xbf16>
    tpu.vector_store %arg4[%c0_10, %c0_11], %28 {strides = array<i32>} : memref<8x128xbf16, #tpu.memory_space<vmem>>, vector<8x128xbf16>,
    return
  }
  func.func @transform_0(%arg0: i32) -> (i32, i32) {
    %c0_i32 = arith.constant 0 : i32
    %c0_i32_0 = arith.constant 0 : i32
    return %arg0, %c0_i32 : i32, i32
  }
  func.func @transform_1(%arg0: i32) -> (i32, i32) {
    %c0_i32 = arith.constant 0 : i32
    %c0_i32_0 = arith.constant 0 : i32
    %c0_i32_1 = arith.constant 0 : i32
    return %c0_i32, %c0_i32_0 : i32, i32
  }
  func.func @transform_2(%arg0: i32) -> (i32, i32) {
    %c0_i32 = arith.constant 0 : i32
    %c0_i32_0 = arith.constant 0 : i32
    %c0_i32_1 = arith.constant 0 : i32
    return %c0_i32, %c0_i32_0 : i32, i32
  }
  func.func @transform_3(%arg0: i32) -> (i32, i32) {
    %c0_i32 = arith.constant 0 : i32
    %c0_i32_0 = arith.constant 0 : i32
    return %arg0, %c0_i32 : i32, i32
  }
}

</mosaic_0001>

<llo_original>
// kernel: bert_embeddings_with_debias.1
$region0: #{bert_embeddings_with_debias.1}
  #allocation0 [shape = 'u32[]', space=smem, size = 0x4, offset = 0x4, fixed_abs, tag = 'smem constant byte address 0x4 - core index']
  #allocation1 [shape = 'u32[144,128]{1,0:T(1,128)}', space=vmem, size = 0x12000, scoped, tag = 'internal scratch']
  %s0 = inlined_call_operand.vmem [shape: bf16[16,128], index: 0, kind: input, shape index: {}]
  %s1 = inlined_call_operand.vmem [shape: f32[1,128], index: 1, kind: input, shape index: {}]
  %s2 = inlined_call_operand.vmem [shape: f32[1,128], index: 2, kind: input, shape index: {}]
  %s3 = inlined_call_operand.hbm [shape: bf16[16,128], index: 3, kind: output, shape index: {}]
  %s4 = sld [smem:[#allocation0]]
  $region45: #{bert_embeddings_with_debias.1} parent=0
    _
  %s6 = ssub.s32 1, %s4
  %s7 = scalar_select 0, %s6, %s4
  $region1: #{bert_embeddings_with_debias.1} parent=0
    #allocation2 [shape = 'u8[4096]{0}', space=vmem, size = 0x1000, scoped, tag = 'output window, operand 0']
    #allocation3 [shape = 's32[2]{0}', space=sflag, size = 0x8, scoped, tag = 'scoped memory for bert_embeddings_with_debias.1']
    %8 = vsyncpa [#allocation3], 0
    %s9 = scalar_lea.sflag [#allocation3], 1
    %10 = vsyncpa %s9, 0
    loop: start=0, step=1, limit=4
    $region2: #{bert_embeddings_with_debias.1} parent=1 // loop_pre_header
      _
    $region3: #{bert_embeddings_with_debias.1} parent=1 // loop_header
      %s12 = sphi 0, %s16
      %p13 = scmp.ge.s32.totalorder %s12, 4
      %s22 = sphi 0, %s24
      %s25 = sphi 0, %s22
      %s26 = sphi 0, %s25
      %s42 = sphi 0, %s26
      %s46 = sphi 0, %s46
      %s48 = sphi 0, %s46
      %s49 = sphi 0, %s48
      %s63 = sphi 0, %s49
      %s67 = sphi 0, %s67
      %s69 = sphi 0, %s67
      %s70 = sphi 0, %s69
      %s84 = sphi 0, %s70
      %s90 = sphi 0, %s92
      %s93 = sphi 0, %s90
      %s94 = sphi 0, %s93
      %s110 = sphi 0, %s94
    $region4: #{bert_embeddings_with_debias.1} parent=1 // loop_header_branch
      %15 = sbr.rel (%p13) target = $region8
    $region5: #{bert_embeddings_with_debias.1} parent=1 // loop_body
      %s17 = ssub.s32 %s12, 1
      %s18 = ssub.s32 %s12, 2
      %s19 = sadd.s32 %s12, 1
      %s20 = ssub.s32 %s12, %s19
      %p21 = scmp.eq.s32.totalorder %s20, 0
      %s23 = sadd.s32 %s22, 1
      %s24 = scalar_select %p21, %s22, %s23
      %p27 = pneg %p21
      %p28 = scmp.eq.s32.totalorder %s12, 1
      %p29 = por %p27, %p28
      %p30 = scmp.ne.s32.totalorder %s22, %s25
      %p31 = scmp.eq.s32.totalorder %s12, 0
      %p32 = por %p30, %p31
      %p33 = scmp.ne.s32.totalorder %s22, %s25
      %p34 = scmp.eq.s32.totalorder %s17, 1
      %p35 = por %p33, %p34
      %p36 = scmp.ne.s32.totalorder %s25, %s26
      %p37 = scmp.eq.s32.totalorder %s17, 0
      %p38 = por %p36, %p37
      %p39 = scmp.ne.s32.totalorder %s25, %s26
      %p40 = scmp.eq.s32.totalorder %s18, 1
      %p41 = por %p39, %p40
      %p43 = scmp.ne.s32.totalorder %s26, %s42
      %p44 = scmp.eq.s32.totalorder %s18, 0
      %p45 = por %p43, %p44
      %s47 = sadd.s32 %s46, 1
      %p50 = scmp.eq.s32.totalorder %s12, 1
      %p51 = scmp.ne.s32.totalorder %s46, %s48
      %p52 = scmp.eq.s32.totalorder %s12, 0
      %p53 = por %p51, %p52
      %p54 = scmp.ne.s32.totalorder %s46, %s48
      %p55 = scmp.eq.s32.totalorder %s17, 1
      %p56 = por %p54, %p55
      %p57 = scmp.ne.s32.totalorder %s48, %s49
      %p58 = scmp.eq.s32.totalorder %s17, 0
      %p59 = por %p57, %p58
      %p60 = scmp.ne.s32.totalorder %s48, %s49
      %p61 = scmp.eq.s32.totalorder %s18, 1
      %p62 = por %p60, %p61
      %p64 = scmp.ne.s32.totalorder %s49, %s63
      %p65 = scmp.eq.s32.totalorder %s18, 0
      %p66 = por %p64, %p65
      %s68 = sadd.s32 %s67, 1
      %p71 = scmp.eq.s32.totalorder %s12, 1
      %p72 = scmp.ne.s32.totalorder %s67, %s69
      %p73 = scmp.eq.s32.totalorder %s12, 0
      %p74 = por %p72, %p73
      %p75 = scmp.ne.s32.totalorder %s67, %s69
      %p76 = scmp.eq.s32.totalorder %s17, 1
      %p77 = por %p75, %p76
      %p78 = scmp.ne.s32.totalorder %s69, %s70
      %p79 = scmp.eq.s32.totalorder %s17, 0
      %p80 = por %p78, %p79
      %p81 = scmp.ne.s32.totalorder %s69, %s70
      %p82 = scmp.eq.s32.totalorder %s18, 1
      %p83 = por %p81, %p82
      %p85 = scmp.ne.s32.totalorder %s70, %s84
      %p86 = scmp.eq.s32.totalorder %s18, 0
      %p87 = por %p85, %p86
      %s88 = ssub.s32 %s12, %s19
      %p89 = scmp.eq.s32.totalorder %s88, 0
      %s91 = sadd.s32 %s90, 1
      %s92 = scalar_select %p89, %s90, %s91
      %p95 = pneg %p89
      %p96 = scmp.eq.s32.totalorder %s12, 1
      %p97 = por %p95, %p96
      %p98 = scmp.ne.s32.totalorder %s90, %s93
      %p99 = scmp.eq.s32.totalorder %s12, 0
      %p100 = por %p98, %p99
      %p101 = scmp.ne.s32.totalorder %s90, %s93
      %p102 = scmp.eq.s32.totalorder %s17, 1
      %p103 = por %p101, %p102
      %p104 = scmp.ne.s32.totalorder %s93, %s94
      %p105 = scmp.eq.s32.totalorder %s17, 0
      %p106 = por %p104, %p105
      %p107 = scmp.ne.s32.totalorder %s93, %s94
      %p108 = scmp.eq.s32.totalorder %s18, 1
      %p109 = por %p107, %p108
      %p111 = scmp.ne.s32.totalorder %s94, %s110
      %p112 = scmp.eq.s32.totalorder %s18, 0
      %p113 = por %p111, %p112
      %p114 = scmp.le.s32.totalorder 1, %s12
      %p115 = scmp.lt.s32.totalorder %s12, 3
      %p116 = pnand %p114, %p115
      %p117 = pneg %p116
      // Predicated region
      $region9: #{bert_embeddings_with_debias.1} parent=5 // pred_check
        _
      $region10: #{bert_embeddings_with_debias.1} parent=5 // pred_check_branch
        %119 = sbr.rel (%p116) target = $region12
      $region11: #{bert_embeddings_with_debias.1} parent=5 // pred_region
        %s120 = ssub.s32 %s12, 1
        // Predicated region
        $region13: #{bert_embeddings_with_debias.1} parent=11 // pred_check
          %p121 = pneg %p59
        $region14: #{bert_embeddings_with_debias.1} parent=11 // pred_check_branch
          %123 = sbr.rel (%p121) target = $region16
        $region15: #{bert_embeddings_with_debias.1} parent=11 // pred_region
          _
        $region16: #{bert_embeddings_with_debias.1} parent=11 // pred_fallthru
          _
        // Predicated region
        $region17: #{bert_embeddings_with_debias.1} parent=11 // pred_check
          %p124 = pneg %p80
        $region18: #{bert_embeddings_with_debias.1} parent=11 // pred_check_branch
          %126 = sbr.rel (%p124) target = $region20
        $region19: #{bert_embeddings_with_debias.1} parent=11 // pred_region
          _
        $region20: #{bert_embeddings_with_debias.1} parent=11 // pred_fallthru
          _
      $region12: #{bert_embeddings_with_debias.1} parent=5 // pred_fallthru
        _
      %p127 = scmp.lt.s32.totalorder %s12, 2
      // Predicated region
      $region21: #{bert_embeddings_with_debias.1} parent=5 // pred_check
        %p128 = pneg %p127
      $region22: #{bert_embeddings_with_debias.1} parent=5 // pred_check_branch
        %130 = sbr.rel (%p128) target = $region24
      $region23: #{bert_embeddings_with_debias.1} parent=5 // pred_region
        // Predicated region
        $region25: #{bert_embeddings_with_debias.1} parent=23 // pred_check
          %p131 = pneg %p32
        $region26: #{bert_embeddings_with_debias.1} parent=23 // pred_check_branch
          %133 = sbr.rel (%p131) target = $region28
        $region27: #{bert_embeddings_with_debias.1} parent=23 // pred_region
          %p134 = scmp.lt.s32.totalorder %s12, 1
          %s135 = scalar_select %p134, %s12, 1
          %s136 = smul.addr %s135, 4
          %s137 = scalar_lea.vmem %s0, %s136
        $region28: #{bert_embeddings_with_debias.1} parent=23 // pred_fallthru
          _
      $region24: #{bert_embeddings_with_debias.1} parent=5 // pred_fallthru
        _
      %p138 = scmp.le.s32.totalorder 1, %s12
      %p139 = scmp.lt.s32.totalorder %s12, 3
      %p140 = pnand %p138, %p139
      %p141 = pneg %p140
      // Predicated region
      $region29: #{bert_embeddings_with_debias.1} parent=5 // pred_check
        _
      $region30: #{bert_embeddings_with_debias.1} parent=5 // pred_check_branch
        %143 = sbr.rel (%p140) target = $region32
      $region31: #{bert_embeddings_with_debias.1} parent=5 // pred_region
        %s144 = ssub.s32 %s12, 1
        %p145 = scmp.lt.s32.totalorder %s17, 1
        %s146 = scalar_select %p145, %s17, 1
        %s147 = smul.addr %s146, 4
        %s148 = scalar_lea.vmem %s0, %s147
        %p149 = pneg %p38
        %p150 = pneg %p35
        %p151 = pneg %p59
        %p152 = pneg %p56
        %p153 = pneg %p80
        %p154 = pneg %p77
        %p155 = pneg %p106
        %p156 = pneg %p103
        %s157 = sand.u32 %s93, 1
        %s158 = scalar_lea.sflag [#allocation3], %s157
        %s159 = sand.u32 %s93, 1
        %s160 = smul.addr %s159, 4
        %s161 = scalar_lea.vmem [#allocation2], %s160
        %p162 = scmp.lt.s32.totalorder %s17, 1
        %s163 = scalar_select %p162, %s17, 1
        %s164 = smul.addr %s163, 4
        %s165 = scalar_lea.vmem %s0, %s164
        %v166 = vld [vmem:[%s165] sm:$0xf]
        %v167 = vunpack.c.l.bf16 %v166
        %168 = vadd.xlane.f32.xlu0 %v167
        %v169 = vpop.xlane.xlu0 %168
        %v170 = vmul.f32 %v167, %v167
        %171 = vadd.xlane.f32.xlu0 %v170
        %v172 = vpop.xlane.xlu0 %171
        %v173 = vmul.f32 %v169, 0.0078125
        %v174 = vmul.f32 %v172, 0.0078125
        %v175 = vmul.f32 %v173, %v173
        %v176 = vsub.f32 %v174, %v175
        %v177 = vmax.f32 %v176, 0.0
        %v178 = vadd.f32 %v177, 1e-12
        %v179 = vrsqrt.pop %v178
        %v180 = vsub.f32 %v167, %v173
        %v181 = vmul.f32 %v180, %v179
        %v182 = vld [vmem:[%s1] sm:$0x1]
        %v184 = vlaneseq
        %v185 = vshrl.u32 %v184, 7
        %v186 = vsub.s32 0, %v185
        %v187 = vrot.slane %v182, %v186
        %v189 = vmul.f32 %v181, %v187
        %v190 = vld [vmem:[%s2] sm:$0x1]
        %v192 = vlaneseq
        %v193 = vshrl.u32 %v192, 7
        %v194 = vsub.s32 0, %v193
        %v195 = vrot.slane %v190, %v194
        %v197 = vadd.f32 %v189, %v195
        %v198 = vpack.c.bf16 %v197, %v197
        %199 = vst [vmem:[%s161] sm:$0xf] %v198
        %s200 = sand.u32 %s93, 1
        %s201 = scalar_lea.sflag [#allocation3], %s200
        %s202 = sand.u32 %s93, 1
        %s203 = smul.addr %s202, 4
        %s204 = scalar_lea.vmem [#allocation2], %s203
        // Predicated region
        $region33: #{bert_embeddings_with_debias.1} parent=31 // pred_check
          %p205 = pneg %p103
        $region34: #{bert_embeddings_with_debias.1} parent=31 // pred_check_branch
          %207 = sbr.rel (%p205) target = $region36
        $region35: #{bert_embeddings_with_debias.1} parent=31 // pred_region
          %s209 = ssub.s32 64, 64
          %210 = vsyncadd %s201, %s209
          %s211 = smul.addr %s17, 64
          %s212 = scalar_lea.hbm %s3, %s211
          %s214 = sshll.u32 %s204, 4
          %s215 = int_to_ptr.vmem [resolvable:$true] %s214
          %217 = dma.vmem_to_hbm [thread:$0]  %s215, 64, %s212, %s201
        $region36: #{bert_embeddings_with_debias.1} parent=31 // pred_fallthru
          _
      $region32: #{bert_embeddings_with_debias.1} parent=5 // pred_fallthru
        _
      %p218 = scmp.le.s32.totalorder 2, %s12
      // Predicated region
      $region37: #{bert_embeddings_with_debias.1} parent=5 // pred_check
        %p219 = pneg %p218
      $region38: #{bert_embeddings_with_debias.1} parent=5 // pred_check_branch
        %221 = sbr.rel (%p219) target = $region40
      $region39: #{bert_embeddings_with_debias.1} parent=5 // pred_region
        %s222 = ssub.s32 %s12, 2
        // Predicated region
        $region41: #{bert_embeddings_with_debias.1} parent=39 // pred_check
          %p223 = pneg %p109
        $region42: #{bert_embeddings_with_debias.1} parent=39 // pred_check_branch
          %225 = sbr.rel (%p223) target = $region44
        $region43: #{bert_embeddings_with_debias.1} parent=39 // pred_region
          %s226 = sand.u32 %s94, 1
          %s227 = scalar_lea.sflag [#allocation3], %s226
          %s228 = sand.u32 %s94, 1
          %s229 = smul.addr %s228, 4
          %s230 = scalar_lea.vmem [#allocation2], %s229
          %231 = dma.done %s227, 64
        $region44: #{bert_embeddings_with_debias.1} parent=39 // pred_fallthru
          _
      $region40: #{bert_embeddings_with_debias.1} parent=5 // pred_fallthru
        _
    $region6: #{bert_embeddings_with_debias.1} parent=1 // loop_footer
      %s16 = sadd.s32 1, %s12
    $region7: #{bert_embeddings_with_debias.1} parent=1 // loop_footer_branch
      %11 = sbr.rel target = $region3
    $region8: #{bert_embeddings_with_debias.1} parent=1 // loop_exit
      _
    %232 = vsyncpa [#allocation3], 1
    %s233 = scalar_lea.sflag [#allocation3], 1
    %234 = vsyncpa %s233, 1

</llo_original>
